<compile_context>
chip_gen: v5e
topology: v5e:2x2
jax: 0.10.0
libtpu: 0.0.40
codegen_flags: <defaults>
</compile_context>

<pallas_src>
import jax
import jax.numpy as jnp
import numpy as np
from jax.experimental import pallas as pl
from jax.experimental.pallas import tpu as pltpu


# ----------------------------------------------------------------------------
# Pallas kernel: two fused matmuls + bias + ReLU. Rows (bs*T) are independent.
# ----------------------------------------------------------------------------
def cnn1_kernel(x_ref, a1_ref, b1_ref, a2_ref, b2_ref, out_ref):
    x = x_ref[...]                                               # (bm, N)
    # conv1 + BN1 (folded) + ReLU  ->  (bm, C1*L1)
    h1 = jnp.dot(x, a1_ref[...], preferred_element_type=jnp.float32) + b1_ref[...]
    h1 = jnp.maximum(h1, 0.0)
    # avgpool + conv2 + BN2 (folded) + ReLU  ->  (bm, C2*L2)
    h2 = jnp.dot(h1, a2_ref[...], preferred_element_type=jnp.float32) + b2_ref[...]
    out_ref[...] = jnp.maximum(h2, 0.0)


# ----------------------------------------------------------------------------
# One-time host-side parameter repacking (exact, float64 numpy).
#   conv1 -> A1 (N, C1*L1), b1f (1, C1*L1)           [BN1 folded in]
#   pool+conv2 -> A23 (C1*L1, C2*L2), b2f (1, C2*L2) [BN2 folded in]
# Column order of the final output is o*L2 + j == torch's (C, L) flatten.
# ----------------------------------------------------------------------------
def pack_cnn1_params(w1, b1, g1, be1, rm1, rv1,
                     w2, b2, g2, be2, rm2, rv2, num_sensors, eps=1e-5):
    f64 = lambda a: np.asarray(a, np.float64)
    w1, b1, g1, be1, rm1, rv1 = map(f64, (w1, b1, g1, be1, rm1, rv1))
    w2, b2, g2, be2, rm2, rv2 = map(f64, (w2, b2, g2, be2, rm2, rv2))

    N = num_sensors
    C1, _, K1 = w1.shape                 # (8, 1, 2)
    C2, _, K2 = w2.shape                 # (out_dimen, 8, 2)
    L1 = N - (K1 - 1)                    # conv1 output length
    Lp = (L1 - 2) // 2 + 1               # avgpool(k=2, s=2) output length
    L2 = Lp - (K2 - 1)                   # conv2 output length

    # fold eval-mode BatchNorm into the convs
    s1 = g1 / np.sqrt(rv1 + eps)
    w1e = w1[:, 0, :] * s1[:, None]      # (C1, K1)
    b1e = (b1 - rm1) * s1 + be1          # (C1,)
    s2 = g2 / np.sqrt(rv2 + eps)
    w2e = w2 * s2[:, None, None]         # (C2, C1, K2)
    b2e = (b2 - rm2) * s2 + be2          # (C2,)

    # stage 1: conv1 as x (M,N) @ A1 -> (M, C1*L1), column = c*L1 + i
    A1 = np.zeros((N, C1 * L1), np.float64)
    for c in range(C1):
        for i in range(L1):
            for k in range(K1):
                A1[i + k, c * L1 + i] += w1e[c, k]
    b1f = np.repeat(b1e, L1)[None, :]

    # avgpool as a 0/0.5 selection matrix
    A2 = np.zeros((C1 * L1, C1 * Lp), np.float64)
    for c in range(C1):
        for j in range(Lp):
            A2[c * L1 + 2 * j,     c * Lp + j] = 0.5
            A2[c * L1 + 2 * j + 1, c * Lp + j] = 0.5

    # conv2 (BN2-folded), output column = o*L2 + j (torch reshape order)
    A3 = np.zeros((C1 * Lp, C2 * L2), np.float64)
    for o in range(C2):
        for c in range(C1):
            for j in range(L2):
                for k in range(K2):
                    A3[c * Lp + j + k, o * L2 + j] += w2e[o, c, k]

    A23 = A2 @ A3                        # fuse pool + conv2 into one matmul
    b2f = np.repeat(b2e, L2)[None, :]

    f32 = lambda a: jnp.asarray(a, jnp.float32)
    return f32(A1), f32(b1f), f32(A23), f32(b2f)


# ----------------------------------------------------------------------------
# Wrapper: tile the flattened batch dim (bs*T); weights stay fully resident.
# ----------------------------------------------------------------------------
def cnn1_forward(x, packed):
    a1, b1f, a2, b2f = packed
    bs, T, N = x.shape
    M = bs * T
    F = a2.shape[1]
    xf = x.reshape(M, N)

    if M <= 1024:          # toy / moderate sizes: single block, single grid step
        bm = M
    else:                  # large batches: tile rows (boundary blocks are masked)
        bm = 1024
    grid = (pl.cdiv(M, bm),)

    out = pl.pallas_call(
        cnn1_kernel,
        out_shape=jax.ShapeDtypeStruct((M, F), jnp.float32),
        grid_spec=pltpu.PrefetchScalarGridSpec(
            num_scalar_prefetch=0,
            grid=grid,
            in_specs=[
                pl.BlockSpec((bm, N), lambda i: (i, 0)),        # x rows
                pl.BlockSpec(a1.shape, lambda i: (0, 0)),       # conv1 matmul operand
                pl.BlockSpec(b1f.shape, lambda i: (0, 0)),      # conv1 bias (folded BN1)
                pl.BlockSpec(a2.shape, lambda i: (0, 0)),       # pool+conv2 operand
                pl.BlockSpec(b2f.shape, lambda i: (0, 0)),      # conv2 bias (folded BN2)
            ],
            out_specs=pl.BlockSpec((bm, F), lambda i: (i, 0)),
        ),
        compiler_params=pltpu.CompilerParams(
            dimension_semantics=("parallel",)),                 # rows independent
    )(xf, a1, b1f, a2, b2f)

    return out.reshape(bs, T, F)


# ----------------------------------------------------------------------------
# Pure-numpy reference (mirrors the PyTorch forward, eval-mode BatchNorm)
# ----------------------------------------------------------------------------
def cnn1_reference_np(x, params, eps=1e-5):
    (w1, b1, g1, be1, rm1, rv1, w2, b2, g2, be2, rm2, rv2) = [
        np.asarray(p, np.float64) for p in params]
    x = np.asarray(x, np.float64)
    bs, T, N = x.shape
    xf = x.reshape(bs * T, N)

    # Conv1d(1, 8, k=2) + BN1 + ReLU
    w10, w11 = w1[:, 0, 0], w1[:, 0, 1]
    y1 = (xf[:, None, :-1] * w10[None, :, None]
          + xf[:, None, 1:] * w11[None, :, None]
          + b1[None, :, None])
    y1 = (y1 - rm1[None, :, None]) / np.sqrt(rv1[None, :, None] + eps) \
        * g1[None, :, None] + be1[None, :, None]
    y1 = np.maximum(y1, 0.0)                                    # (M, 8, L1)

    # AvgPool1d(k=2, s=2)
    L1 = y1.shape[2]
    Lp = (L1 - 2) // 2 + 1
    p = 0.5 * (y1[:, :, 0:2 * Lp:2] + y1[:, :, 1:2 * Lp:2])     # (M, 8, Lp)

    # Conv1d(8, out_dimen, k=2) + BN2 + ReLU
    y2 = (np.einsum('mcj,oc->moj', p[:, :, :-1], w2[:, :, 0])
          + np.einsum('mcj,oc->moj', p[:, :, 1:], w2[:, :, 1])
          + b2[None, :, None])
    y2 = (y2 - rm2[None, :, None]) / np.sqrt(rv2[None, :, None] + eps) \
        * g2[None, :, None] + be2[None, :, None]
    y2 = np.maximum(y2, 0.0)                                    # (M, out_dimen, L2)

    return y2.reshape(bs, T, -1)


if __name__ == "__main__":
    bs, time_length, num_sensors, out_dimen = 2, 8, 16, 4

    key = jax.random.PRNGKey(0)
    keys = jax.random.split(key, 13)
    x = jax.random.normal(keys[0], (bs, time_length, num_sensors), jnp.float32)

    # deterministic synthetic parameters (shapes from the module's __init__)
    w1 = 0.5 * jax.random.normal(keys[1], (8, 1, 2), jnp.float32)           # conv1.weight
    b1 = 0.1 * jax.random.normal(keys[2], (8,), jnp.float32)                # conv1.bias
    g1 = 1.0 + 0.1 * jax.random.normal(keys[3], (8,), jnp.float32)          # bn1.weight
    be1 = 0.1 * jax.random.normal(keys[4], (8,), jnp.float32)               # bn1.bias
    rm1 = 0.1 * jax.random.normal(keys[5], (8,), jnp.float32)               # bn1.running_mean
    rv1 = 0.5 + jax.random.uniform(keys[6], (8,), jnp.float32)              # bn1.running_var
    w2 = 0.3 * jax.random.normal(keys[7], (out_dimen, 8, 2), jnp.float32)   # conv2.weight
    b2 = 0.1 * jax.random.normal(keys[8], (out_dimen,), jnp.float32)        # conv2.bias
    g2 = 1.0 + 0.1 * jax.random.normal(keys[9], (out_dimen,), jnp.float32)  # bn2.weight
    be2 = 0.1 * jax.random.normal(keys[10], (out_dimen,), jnp.float32)      # bn2.bias
    rm2 = 0.1 * jax.random.normal(keys[11], (out_dimen,), jnp.float32)      # bn2.running_mean
    rv2 = 0.5 + jax.random.uniform(keys[12], (out_dimen,), jnp.float32)     # bn2.running_var

    params = (w1, b1, g1, be1, rm1, rv1, w2, b2, g2, be2, rm2, rv2)
    packed = pack_cnn1_params(*params, num_sensors=num_sensors)   # once, outside hot path

    out = cnn1_forward(x, packed)
    jax.block_until_ready(out)

    out_ref = cnn1_reference_np(np.asarray(x), params)
    np.testing.assert_allclose(np.asarray(out), out_ref, rtol=1e-4, atol=1e-4)

    print("KERNEL_OK")
</pallas_src>

<mosaic_0001>
module attributes {stable_mosaic.version = 11 : i64} {
  func.func @cnn1_kernel(%arg0: i32, %arg1: memref<16x16xf32, #tpu.memory_space<vmem>>, %arg2: memref<16x120xf32, #tpu.memory_space<vmem>>, %arg3: memref<1x120xf32, #tpu.memory_space<vmem>>, %arg4: memref<120x24xf32, #tpu.memory_space<vmem>>, %arg5: memref<1x24xf32, #tpu.memory_space<vmem>>, %arg6: memref<16x24xf32, #tpu.memory_space<vmem>>) attributes {dimension_semantics = [#tpu.dimension_semantics<parallel>], iteration_bounds = array<i64: 1>, scalar_prefetch = 0 : i64, scratch_operands = 0 : i64, tpu.core_type = #tpu.core_type<tc>, window_params = [{transform_indices = @transform_0, window_bounds = array<i64: 16, 16>}, {pipeline_mode = #tpu.pipeline_mode<synchronous>, transform_indices = @transform_1, window_bounds = array<i64: 16, 120>}, {pipeline_mode = #tpu.pipeline_mode<synchronous>, transform_indices = @transform_2, window_bounds = array<i64: 1, 120>}, {pipeline_mode = #tpu.pipeline_mode<synchronous>, transform_indices = @transform_3, window_bounds = array<i64: 120, 24>}, {pipeline_mode = #tpu.pipeline_mode<synchronous>, transform_indices = @transform_4, window_bounds = array<i64: 1, 24>}, {transform_indices = @transform_5, window_bounds = array<i64: 16, 24>}]} {
    %c0 = arith.constant 0 : index
    %c0_0 = arith.constant 0 : index
    %0 = vector.load %arg1[%c0, %c0_0] : memref<16x16xf32, #tpu.memory_space<vmem>>, vector<16x16xf32>
    %c0_1 = arith.constant 0 : index
    %c0_2 = arith.constant 0 : index
    %1 = vector.load %arg2[%c0_1, %c0_2] : memref<16x120xf32, #tpu.memory_space<vmem>>, vector<16x120xf32>
    %cst = arith.constant dense<0.000000e+00> : vector<16x120xf32>
    %2 = tpu.matmul %0, %1, %cst {dimension_numbers = #tpu.dot_dimension_numbers<[1], [0], [0], [1], [0, 0, 1, 1], [], []>} : vector<16x16xf32>, vector<16x120xf32>, vector<16x120xf32> -> vector<16x120xf32>
    %c0_3 = arith.constant 0 : index
    %c0_4 = arith.constant 0 : index
    %3 = vector.load %arg3[%c0_3, %c0_4] : memref<1x120xf32, #tpu.memory_space<vmem>>, vector<1x120xf32>
    %4 = vector.broadcast %3 : vector<1x120xf32> to vector<16x120xf32>
    %5 = arith.addf %2, %4 : vector<16x120xf32>
    %cst_5 = arith.constant 0.000000e+00 : f32
    %6 = vector.broadcast %cst_5 : f32 to vector<16x120xf32>
    %7 = arith.maximumf %5, %6 : vector<16x120xf32>
    %c0_6 = arith.constant 0 : index
    %c0_7 = arith.constant 0 : index
    %8 = vector.load %arg4[%c0_6, %c0_7] : memref<120x24xf32, #tpu.memory_space<vmem>>, vector<120x24xf32>
    %cst_8 = arith.constant dense<0.000000e+00> : vector<16x24xf32>
    %9 = tpu.matmul %7, %8, %cst_8 {dimension_numbers = #tpu.dot_dimension_numbers<[1], [0], [0], [1], [0, 0, 1, 1], [], []>} : vector<16x120xf32>, vector<120x24xf32>, vector<16x24xf32> -> vector<16x24xf32>
    %c0_9 = arith.constant 0 : index
    %c0_10 = arith.constant 0 : index
    %10 = vector.load %arg5[%c0_9, %c0_10] : memref<1x24xf32, #tpu.memory_space<vmem>>, vector<1x24xf32>
    %11 = vector.broadcast %10 : vector<1x24xf32> to vector<16x24xf32>
    %12 = arith.addf %9, %11 : vector<16x24xf32>
    %cst_11 = arith.constant 0.000000e+00 : f32
    %13 = vector.broadcast %cst_11 : f32 to vector<16x24xf32>
    %14 = arith.maximumf %12, %13 : vector<16x24xf32>
    %c0_12 = arith.constant 0 : index
    %c0_13 = arith.constant 0 : index
    %15 = vector.load %arg6[%c0_12, %c0_13] : memref<16x24xf32, #tpu.memory_space<vmem>>, vector<16x24xf32>
    tpu.vector_store %arg6[%c0_12, %c0_13], %14 {strides = array<i32>} : memref<16x24xf32, #tpu.memory_space<vmem>>, vector<16x24xf32>,
    return
  }
  func.func @transform_0(%arg0: i32) -> (i32, i32) {
    %c0_i32 = arith.constant 0 : i32
    %c0_i32_0 = arith.constant 0 : i32
    return %arg0, %c0_i32 : i32, i32
  }
  func.func @transform_1(%arg0: i32) -> (i32, i32) {
    %c0_i32 = arith.constant 0 : i32
    %c0_i32_0 = arith.constant 0 : i32
    %c0_i32_1 = arith.constant 0 : i32
    return %c0_i32, %c0_i32_0 : i32, i32
  }
  func.func @transform_2(%arg0: i32) -> (i32, i32) {
    %c0_i32 = arith.constant 0 : i32
    %c0_i32_0 = arith.constant 0 : i32
    %c0_i32_1 = arith.constant 0 : i32
    return %c0_i32, %c0_i32_0 : i32, i32
  }
  func.func @transform_3(%arg0: i32) -> (i32, i32) {
    %c0_i32 = arith.constant 0 : i32
    %c0_i32_0 = arith.constant 0 : i32
    %c0_i32_1 = arith.constant 0 : i32
    return %c0_i32, %c0_i32_0 : i32, i32
  }
  func.func @transform_4(%arg0: i32) -> (i32, i32) {
    %c0_i32 = arith.constant 0 : i32
    %c0_i32_0 = arith.constant 0 : i32
    %c0_i32_1 = arith.constant 0 : i32
    return %c0_i32, %c0_i32_0 : i32, i32
  }
  func.func @transform_5(%arg0: i32) -> (i32, i32) {
    %c0_i32 = arith.constant 0 : i32
    %c0_i32_0 = arith.constant 0 : i32
    return %arg0, %c0_i32 : i32, i32
  }
}

</mosaic_0001>

<llo_original>
// kernel: tpu_custom_call.1
$region0: #{tpu_custom_call.1}
  #allocation0 [shape = 'u32[]', space=smem, size = 0x4, offset = 0x4, fixed_abs, tag = 'smem constant byte address 0x4 - core index']
  #allocation1 [shape = 'u32[72,128]{1,0:T(1,128)}', space=vmem, size = 0x9000, scoped, tag = 'internal scratch']
  %s0 = inlined_call_operand.vmem [shape: f32[16,16], index: 0, kind: input, shape index: {}]
  %s1 = inlined_call_operand.vmem [shape: f32[16,120], index: 1, kind: input, shape index: {}]
  %s2 = inlined_call_operand.vmem [shape: f32[1,120], index: 2, kind: input, shape index: {}]
  %s3 = inlined_call_operand.vmem [shape: f32[120,24], index: 3, kind: input, shape index: {}]
  %s4 = inlined_call_operand.vmem [shape: f32[1,24], index: 4, kind: input, shape index: {}]
  %s5 = inlined_call_operand.hbm [shape: f32[16,24], index: 5, kind: output, shape index: {}]
  %s6 = sld [smem:[#allocation0]]
  $region30: #{tpu_custom_call.1} parent=0
    _
  %s8 = ssub.s32 1, %s6
  %s9 = scalar_select 0, %s8, %s6
  $region1: #{tpu_custom_call.1} parent=0
    #allocation2 [shape = 'u8[8192]{0}', space=vmem, size = 0x2000, scoped, tag = 'output window, operand 0, single buffered']
    #allocation3 [shape = 's32[1]{0}', space=sflag, size = 0x4, scoped, tag = 'scoped memory for tpu_custom_call.1']
    %10 = vsyncpa [#allocation3], 0
    // Predicated region
    $region2: #{tpu_custom_call.1} parent=1 // pred_check
      _
    $region3: #{tpu_custom_call.1} parent=1 // pred_check_branch
      %12 = sbr.rel (0) target = $region5
    $region4: #{tpu_custom_call.1} parent=1 // pred_region
      _
    $region5: #{tpu_custom_call.1} parent=1 // pred_fallthru
      _
    // Predicated region
    $region6: #{tpu_custom_call.1} parent=1 // pred_check
      _
    $region7: #{tpu_custom_call.1} parent=1 // pred_check_branch
      %14 = sbr.rel (0) target = $region9
    $region8: #{tpu_custom_call.1} parent=1 // pred_region
      _
    $region9: #{tpu_custom_call.1} parent=1 // pred_fallthru
      _
    // Predicated region
    $region10: #{tpu_custom_call.1} parent=1 // pred_check
      _
    $region11: #{tpu_custom_call.1} parent=1 // pred_check_branch
      %16 = sbr.rel (0) target = $region13
    $region12: #{tpu_custom_call.1} parent=1 // pred_region
      _
    $region13: #{tpu_custom_call.1} parent=1 // pred_fallthru
      _
    // Predicated region
    $region14: #{tpu_custom_call.1} parent=1 // pred_check
      _
    $region15: #{tpu_custom_call.1} parent=1 // pred_check_branch
      %18 = sbr.rel (0) target = $region17
    $region16: #{tpu_custom_call.1} parent=1 // pred_region
      _
    $region17: #{tpu_custom_call.1} parent=1 // pred_fallthru
      _
    // Predicated region
    $region18: #{tpu_custom_call.1} parent=1 // pred_check
      _
    $region19: #{tpu_custom_call.1} parent=1 // pred_check_branch
      %20 = sbr.rel (0) target = $region21
    $region20: #{tpu_custom_call.1} parent=1 // pred_region
      _
    $region21: #{tpu_custom_call.1} parent=1 // pred_fallthru
      _
    %v21 = vld [vmem:[%s0] sm:$0xff]
    %v22 = vld [vmem:[%s0 + $0x8] sm:$0xff]
    %v23 = vld [vmem:[%s1] sm:$0xff]
    %v24 = vld [vmem:[%s1 + $0x8] sm:$0xff]
    %v25 = vld [vmem:[%s2] sm:$0x1]
    %v27 = vperm.slane %v25, 0
    %vm29 = vcmask 130048
    %v31 = vsel %vm29, %v21, 0
    %v34 = vsel %vm29, %v22, 0
    %36 = vmatpush.msra.mxu0 0.0
    %37 = vmatpush.msra.mxu0 0.0
    %38 = vmatpush.msra.mxu0 0.0
    %39 = vmatpush.msra.mxu0 0.0
    %40 = vmatpush.msra.mxu0 0.0
    %41 = vmatpush.msra.mxu0 0.0
    %42 = vmatpush.msra.mxu0 0.0
    %43 = vmatpush.msra.mxu0 0.0
    %44 = vmatpush.msra.mxu0 0.0
    %45 = vmatpush.msra.mxu0 0.0
    %46 = vmatpush.msra.mxu0 0.0
    %47 = vmatpush.msra.mxu0 0.0
    %48 = vmatpush.msra.mxu0 0.0
    %49 = vmatpush.msra.mxu0 0.0
    %50 = vmatpush.msra.mxu0 %v24
    %51 = vmatpush.msra.mxu0 %v23
    %52 = vmatmul.f32.gmra.mxu0 %v31
    %v53 = vpop.f32.mrf.mxu0
    %v54 = vadd.f32 %v27, %v53
    %55 = vmatmul.f32.gmra.mxu0 %v34
    %v56 = vpop.f32.mrf.mxu0
    %v57 = vadd.f32 %v27, %v56
    %58 = vdwg.mxu0
    %v59 = vmax.f32 %v54, 0.0
    %v60 = vmax.f32 %v57, 0.0
    %v61 = vld [vmem:[%s3] sm:$0xff]
    %v62 = vld [vmem:[%s3 + $0x8] sm:$0xff]
    %v63 = vld [vmem:[%s3 + $0x10] sm:$0xff]
    %v64 = vld [vmem:[%s3 + $0x18] sm:$0xff]
    %v65 = vld [vmem:[%s3 + $0x20] sm:$0xff]
    %v66 = vld [vmem:[%s3 + $0x28] sm:$0xff]
    %v67 = vld [vmem:[%s3 + $0x30] sm:$0xff]
    %v68 = vld [vmem:[%s3 + $0x38] sm:$0xff]
    %v69 = vld [vmem:[%s3 + $0x40] sm:$0xff]
    %v70 = vld [vmem:[%s3 + $0x48] sm:$0xff]
    %v71 = vld [vmem:[%s3 + $0x50] sm:$0xff]
    %v72 = vld [vmem:[%s3 + $0x58] sm:$0xff]
    %v73 = vld [vmem:[%s3 + $0x60] sm:$0xff]
    %v74 = vld [vmem:[%s3 + $0x68] sm:$0xff]
    %v75 = vld [vmem:[%s3 + $0x70] sm:$0xff]
    %v76 = vld [vmem:[%s4] sm:$0x1]
    %v78 = vperm.slane %v76, 0
    %vm80 = vcmask 982016
    %v82 = vsel %vm80, %v59, 0
    %v85 = vsel %vm80, %v60, 0
    %87 = vmatpush.msra.mxu0 0.0
    %88 = vmatpush.msra.mxu0 %v75
    %89 = vmatpush.msra.mxu0 %v74
    %90 = vmatpush.msra.mxu0 %v73
    %91 = vmatpush.msra.mxu0 %v72
    %92 = vmatpush.msra.mxu0 %v71
    %93 = vmatpush.msra.mxu0 %v70
    %94 = vmatpush.msra.mxu0 %v69
    %95 = vmatpush.msra.mxu0 %v68
    %96 = vmatpush.msra.mxu0 %v67
    %97 = vmatpush.msra.mxu0 %v66
    %98 = vmatpush.msra.mxu0 %v65
    %99 = vmatpush.msra.mxu0 %v64
    %100 = vmatpush.msra.mxu0 %v63
    %101 = vmatpush.msra.mxu0 %v62
    %102 = vmatpush.msra.mxu0 %v61
    %103 = vmatmul.f32.gmra.mxu0 %v82
    %v104 = vpop.f32.mrf.mxu0
    %v105 = vadd.f32 %v78, %v104
    %106 = vmatmul.f32.gmra.mxu0 %v85
    %v107 = vpop.f32.mrf.mxu0
    %v108 = vadd.f32 %v78, %v107
    %109 = vdwg.mxu0
    %v110 = vmax.f32 %v105, 0.0
    %v111 = vmax.f32 %v108, 0.0
    %vm112 = vcmask 195584
    %113 = vst.msk [vmem:[#allocation2] sm:$0xff] %vm112, %v110
    %114 = vst.msk [vmem:[#allocation2 + $0x8] sm:$0xff] %vm112, %v111
    // Predicated region
    $region22: #{tpu_custom_call.1} parent=1 // pred_check
      _
    $region23: #{tpu_custom_call.1} parent=1 // pred_check_branch
      %116 = sbr.rel (0) target = $region25
    $region24: #{tpu_custom_call.1} parent=1 // pred_region
      %118 = vsyncadd [#allocation3], 0
      %s119 = sshll.u32 [#allocation2], 4
      %s120 = int_to_ptr.vmem [resolvable:$true] %s119
      %s121 = sshll.u32 %s5, 4
      %s122 = int_to_ptr.hbm [resolvable:$true] %s121
      %127 = dma.vmem_to_hbm [thread:$0]  %s120, 256, %s122, [#allocation3], 128, 128, 8
    $region25: #{tpu_custom_call.1} parent=1 // pred_fallthru
      _
    // Predicated region
    $region26: #{tpu_custom_call.1} parent=1 // pred_check
      _
    $region27: #{tpu_custom_call.1} parent=1 // pred_check_branch
      %129 = sbr.rel (0) target = $region29
    $region28: #{tpu_custom_call.1} parent=1 // pred_region
      %131 = dma.done [#allocation3], 256
    $region29: #{tpu_custom_call.1} parent=1 // pred_fallthru
      _
    %132 = vsyncpa [#allocation3], 1

</llo_original>
